<compile_context>
chip_gen: v5e
topology: v5e:2x2
jax: 0.10.0
libtpu: 0.0.40
codegen_flags: <defaults>
</compile_context>

<pallas_src>
import functools
import math

import jax
import jax.numpy as jnp
from jax import lax
from jax.experimental import pallas as pl
from jax.experimental.pallas import tpu as pltpu


# ---------------------------------------------------------------------------
# Helpers
# ---------------------------------------------------------------------------
def _pick_tile(extent, target, multiples=(128, 8)):
    """Largest divisor of `extent` <= target that is a multiple of one of
    `multiples` (tried in order).  Falls back to the full extent, which is
    always a legal (if large) block, so awkward sizes can never produce an
    illegal (non-multiple-of-8) or degenerate (size-1) tile."""
    if extent <= target:
        return extent
    for m in multiples:
        t = (target // m) * m
        while t >= m:
            if extent % t == 0:
                return t
            t -= m
    # TODO(synk): pad + mask ragged extents instead of a full-extent block.
    return extent


def _vmem_budget():
    """Generation-aware scoped-VMEM limit with headroom below physical VMEM
    (v7x: 64 MiB per TensorCore; v5e/v6e: 128 MiB)."""
    try:
        phys = int(pltpu.get_tpu_info().vmem_capacity_bytes)
    except Exception:  # not on a TPU backend (e.g. interpret mode) / old API
        return 48 * 1024 * 1024, False
    limit = max(32 * 1024 * 1024, min(phys * 3 // 4, 112 * 1024 * 1024))
    return limit, phys >= 100 * 1024 * 1024


# ---------------------------------------------------------------------------
# Kernel 1: QKV projection  q/k/v = x @ W_{q,k,v}^T + b_{q,k,v}
# ---------------------------------------------------------------------------
def qkv_proj_kernel(x_ref, wq_ref, wk_ref, wv_ref, bq_ref, bk_ref, bv_ref,
                    q_ref, k_ref, v_ref, *, compute_dtype):
    # Cast the x tile to the MXU operand dtype once; accumulate in f32.
    x = x_ref[0].astype(compute_dtype)                       # (ts, D)

    def _proj(w_ref, b_ref, o_ref):
        y = jnp.dot(x, w_ref[...], preferred_element_type=jnp.float32)
        o_ref[0] = (y + b_ref[...]).astype(o_ref.dtype)      # f32 bias add

    # Three independent (ts, D) @ (D, tn) matmuls writing straight to q/k/v:
    # no (ts, 3D) intermediate, no slice-copies.
    _proj(wq_ref, bq_ref, q_ref)
    _proj(wk_ref, bk_ref, k_ref)
    _proj(wv_ref, bv_ref, v_ref)


def qkv_projection(x, wq_t, wk_t, wv_t, bq, bk, bv, *, ts, tn, out_dtype,
                   vmem_limit):
    B, S, D = x.shape
    kernel = functools.partial(qkv_proj_kernel, compute_dtype=wq_t.dtype)
    w_spec = pl.BlockSpec((D, tn), lambda b, s, n: (0, n))
    b_spec = pl.BlockSpec((1, tn), lambda b, s, n: (0, n))
    o_spec = pl.BlockSpec((1, ts, tn), lambda b, s, n: (b, s, n))
    return pl.pallas_call(
        kernel,
        out_shape=(jax.ShapeDtypeStruct((B, S, D), out_dtype),) * 3,
        grid_spec=pltpu.PrefetchScalarGridSpec(
            num_scalar_prefetch=0,
            grid=(B, S // ts, D // tn),
            in_specs=[
                pl.BlockSpec((1, ts, D), lambda b, s, n: (b, s, 0)),  # x tile
                w_spec, w_spec, w_spec,                               # W_{q,k,v}^T
                b_spec, b_spec, b_spec,                               # b_{q,k,v}
            ],
            out_specs=(o_spec, o_spec, o_spec),
        ),
        compiler_params=pltpu.CompilerParams(
            dimension_semantics=("parallel", "parallel", "arbitrary"),
            vmem_limit_bytes=vmem_limit,
        ),
    )(x, wq_t, wk_t, wv_t, bq, bk, bv)


# ---------------------------------------------------------------------------
# Kernel 2: flash-style attention (online softmax over KV tiles) fused with
#           the output projection.
# ---------------------------------------------------------------------------
def flash_attn_outproj_kernel(q_ref, k_ref, v_ref, wo_ref, bo_ref, o_ref,
                              m_sc, l_sc, acc_sc, *,
                              num_heads, head_dim, compute_dtype):
    ki = pl.program_id(2)

    @pl.when(ki == 0)
    def _init():
        m_sc[...] = jnp.full(m_sc.shape, -jnp.inf, dtype=m_sc.dtype)
        l_sc[...] = jnp.zeros(l_sc.shape, dtype=l_sc.dtype)
        acc_sc[...] = jnp.zeros(acc_sc.shape, dtype=acc_sc.dtype)

    q = q_ref[0]                         # (tq, D); 1/sqrt(hd) pre-folded
    k = k_ref[0]                         # (tk, D)
    v = v_ref[0]                         # (tk, D)

    # One dense load of the running stats / accumulator per KV step; per-head
    # results are concatenated and written back with one dense store each
    # (avoids H masked narrow stores per step on the single vst slot).
    m_prev = m_sc[...]                   # (tq, H) f32
    l_prev = l_sc[...]                   # (tq, H) f32
    acc_prev = acc_sc[...]               # (tq, D) f32

    tq = q.shape[0]
    m_cols, l_cols, alpha_cols, pv_cols = [], [], [], []
    # Heads are static lane slices of the hidden dim (no (S,H,hd) transposes).
    # TODO(synk): if the bundle dump shows vreg spills at num_heads >= 8, make
    # heads a grid axis ((1, tq, head_dim) blocks) instead of unrolling here.
    for h in range(num_heads):
        sl = slice(h * head_dim, (h + 1) * head_dim)
        # scores = q_h @ k_h^T: contract last dims of both (no transpose).
        s = lax.dot_general(q[:, sl], k[:, sl], (((1,), (1,)), ((), ())),
                            preferred_element_type=jnp.float32)   # (tq, tk)
        m_h_prev = m_prev[:, h:h + 1]                              # (tq, 1)
        m_h = jnp.maximum(m_h_prev, jnp.max(s, axis=-1, keepdims=True))
        alpha = jnp.exp(m_h_prev - m_h)
        # Softmax max/exp/sum stays f32 (v5e has no bf16 VPU/EUP).
        # TODO(synk): optionally compute p in bf16 on v6e/v7x (2x EUP rate).
        p = jnp.exp(s - m_h)                                       # (tq, tk)
        m_cols.append(m_h)
        l_cols.append(alpha * l_prev[:, h:h + 1]
                      + jnp.sum(p, axis=-1, keepdims=True))
        alpha_cols.append(jnp.broadcast_to(alpha, (tq, head_dim)))
        # p cast to the MXU operand dtype only for the PV matmul.
        pv_cols.append(jnp.dot(p.astype(compute_dtype), v[:, sl],
                               preferred_element_type=jnp.float32))  # (tq, hd)

    m_sc[...] = jnp.concatenate(m_cols, axis=1)
    l_sc[...] = jnp.concatenate(l_cols, axis=1)
    acc_sc[...] = (jnp.concatenate(alpha_cols, axis=1) * acc_prev
                   + jnp.concatenate(pv_cols, axis=1))

    @pl.when(ki == pl.num_programs(2) - 1)
    def _finalize():
        # Exact softmax normalization (once per query tile -> negligible cost;
        # the previous approximate reciprocal caused the reference mismatch).
        acc = acc_sc[...]                                          # (tq, D)
        inv = 1.0 / l_sc[...]                                      # (tq, H)
        inv_full = jnp.concatenate(
            [jnp.broadcast_to(inv[:, h:h + 1], (acc.shape[0], head_dim))
             for h in range(num_heads)], axis=1)                   # (tq, D)
        ctx = (acc * inv_full).astype(compute_dtype)
        # Fused output projection on the assembled (tq, D) context.
        y = jnp.dot(ctx, wo_ref[...],
                    preferred_element_type=jnp.float32) + bo_ref[...]
        o_ref[0] = y.astype(o_ref.dtype)


def flash_attention_outproj(q, k, v, wo_t, bo, *, num_heads, tq, tk,
                            out_dtype, vmem_limit):
    B, S, D = q.shape
    head_dim = D // num_heads
    kernel = functools.partial(flash_attn_outproj_kernel,
                               num_heads=num_heads, head_dim=head_dim,
                               compute_dtype=wo_t.dtype)
    return pl.pallas_call(
        kernel,
        out_shape=jax.ShapeDtypeStruct((B, S, D), out_dtype),
        grid_spec=pltpu.PrefetchScalarGridSpec(
            num_scalar_prefetch=0,
            grid=(B, S // tq, S // tk),
            in_specs=[
                pl.BlockSpec((1, tq, D), lambda b, qi, ki: (b, qi, 0)),  # Q
                pl.BlockSpec((1, tk, D), lambda b, qi, ki: (b, ki, 0)),  # K
                pl.BlockSpec((1, tk, D), lambda b, qi, ki: (b, ki, 0)),  # V
                # TODO(synk): for very large D, N-tile W_out^T and/or single-
                # buffer it (pipeline_mode=pl.Buffered(1)) to save v7x VMEM.
                pl.BlockSpec((D, D), lambda b, qi, ki: (0, 0)),          # W_out^T
                pl.BlockSpec((1, D), lambda b, qi, ki: (0, 0)),          # b_out
            ],
            out_specs=pl.BlockSpec((1, tq, D), lambda b, qi, ki: (b, qi, 0)),
            scratch_shapes=[
                pltpu.VMEM((tq, num_heads), jnp.float32),  # running max m
                pltpu.VMEM((tq, num_heads), jnp.float32),  # running sum l
                pltpu.VMEM((tq, D), jnp.float32),          # context accumulator
            ],
        ),
        compiler_params=pltpu.CompilerParams(
            dimension_semantics=("parallel", "parallel", "arbitrary"),
            vmem_limit_bytes=vmem_limit,
        ),
    )(q, k, v, wo_t, bo)


# ---------------------------------------------------------------------------
# Top-level wrapper (matches the PyTorch module's forward, eval mode)
# ---------------------------------------------------------------------------
def multi_head_attention(x, w_qkv, b_qkv, w_out, b_out, *, num_heads,
                         compute_dtype=jnp.bfloat16,
                         q_tile=None, kv_tile=None, proj_tile=None,
                         n_tile=512):
    B, S, D = x.shape
    assert D % num_heads == 0, "hidden_states must be divisible by num_heads"
    head_dim = D // num_heads
    scale = 1.0 / math.sqrt(head_dim)

    vmem_limit, big_vmem = _vmem_budget()
    # Generation-aware tile targets: bigger projection tile when 128 MiB VMEM
    # is available (v5e/v6e); conservative on v7x's 64 MiB.
    proj_tile = proj_tile if proj_tile is not None else (1024 if big_vmem else 512)
    q_tile = q_tile if q_tile is not None else 512
    kv_tile = kv_tile if kv_tile is not None else 512

    # Split the fused QKV weight into per-projection (D, D) pieces, transpose
    # once (kernels do lane-dense x @ W^T with no in-kernel transpose) and
    # fold the 1/sqrt(head_dim) score scale into the Q projection so the hot
    # KV loop has no per-step scale multiply.  MXU operands are cast to
    # compute_dtype here; biases stay f32 (added after f32 accumulation).
    w_q, w_k, w_v = jnp.split(w_qkv, 3, axis=0)
    wq_t = (jnp.transpose(w_q) * scale).astype(compute_dtype)
    wk_t = jnp.transpose(w_k).astype(compute_dtype)
    wv_t = jnp.transpose(w_v).astype(compute_dtype)
    wo_t = jnp.transpose(w_out).astype(compute_dtype)

    b_q, b_k, b_v = jnp.split(b_qkv, 3)
    bq = (b_q * scale).reshape(1, D).astype(jnp.float32)
    bk = b_k.reshape(1, D).astype(jnp.float32)
    bv = b_v.reshape(1, D).astype(jnp.float32)
    bo = b_out.reshape(1, D).astype(jnp.float32)

    ts = _pick_tile(S, proj_tile)
    tq = _pick_tile(S, q_tile)
    tk = _pick_tile(S, kv_tile)
    tn = _pick_tile(D, n_tile, multiples=(128,))  # lane dim: 128-mult or full

    # q/k/v intermediates are written in compute_dtype (bf16 by default):
    # halves kernel-1 HBM writeback and kernel-2 HBM re-read, and feeds the
    # MXU directly.
    q, k, v = qkv_projection(x, wq_t, wk_t, wv_t, bq, bk, bv,
                             ts=ts, tn=tn, out_dtype=compute_dtype,
                             vmem_limit=vmem_limit)
    # TODO(synk): training-mode dropout on attention weights not implemented
    # (eval-mode p=0 identity, matching model.eval()).
    return flash_attention_outproj(q, k, v, wo_t, bo, num_heads=num_heads,
                                   tq=tq, tk=tk, out_dtype=x.dtype,
                                   vmem_limit=vmem_limit)


# ---------------------------------------------------------------------------
# Pure-JAX reference (true f32 baseline: HIGHEST precision dots)
# ---------------------------------------------------------------------------
def reference_mha(x, w_qkv, b_qkv, w_out, b_out, *, num_heads):
    B, S, D = x.shape
    hd = D // num_heads
    hp = jax.lax.Precision.HIGHEST
    qkv = jnp.einsum('bsd,ed->bse', x, w_qkv, precision=hp) + b_qkv
    q, k, v = jnp.split(qkv, 3, axis=-1)
    resh = lambda t: jnp.transpose(t.reshape(B, S, num_heads, hd), (0, 2, 1, 3))
    q, k, v = resh(q), resh(k), resh(v)
    score = jnp.einsum('bhqd,bhkd->bhqk', q, k, precision=hp) / math.sqrt(hd)
    attn = jax.nn.softmax(score, axis=-1)
    out = jnp.einsum('bhqk,bhkd->bhqd', attn, v, precision=hp)
    out = jnp.transpose(out, (0, 2, 1, 3)).reshape(B, S, D)
    return jnp.einsum('bsd,ed->bse', out, w_out, precision=hp) + b_out


if __name__ == "__main__":
    B, S, D = 2, 8, 32
    num_heads = 4

    key = jax.random.PRNGKey(0)
    kx, kw1, kb1, kw2, kb2 = jax.random.split(key, 5)

    x = jax.random.normal(kx, (B, S, D), dtype=jnp.float32)
    # nn.Linear(D, 3D) weight: (3D, D); nn.Linear(D, D): (D, D)
    w_qkv = jax.random.normal(kw1, (3 * D, D), dtype=jnp.float32) / math.sqrt(D)
    b_qkv = jax.random.normal(kb1, (3 * D,), dtype=jnp.float32) * 0.01
    w_out = jax.random.normal(kw2, (D, D), dtype=jnp.float32) / math.sqrt(D)
    b_out = jax.random.normal(kb2, (D,), dtype=jnp.float32) * 0.01

    ref = reference_mha(x, w_qkv, b_qkv, w_out, b_out, num_heads=num_heads)

    # 1) Exact-logic check: f32 MXU operands, exact softmax normalization.
    out_f32 = multi_head_attention(x, w_qkv, b_qkv, w_out, b_out,
                                   num_heads=num_heads,
                                   compute_dtype=jnp.float32)
    out_f32 = jax.block_until_ready(out_f32)
    err_f32 = float(jnp.max(jnp.abs(out_f32 - ref)))
    assert err_f32 < 1e-4, f"f32 kernel mismatch vs reference: max abs err {err_f32}"

    # 2) Default mixed-precision config: bf16 MXU operands / bf16 q,k,v
    #    intermediates, f32 accumulation and f32 softmax math.
    out_bf16 = multi_head_attention(x, w_qkv, b_qkv, w_out, b_out,
                                    num_heads=num_heads,
                                    compute_dtype=jnp.bfloat16)
    out_bf16 = jax.block_until_ready(out_bf16)
    rel = float(jnp.linalg.norm(out_bf16.astype(jnp.float32) - ref)
                / jnp.linalg.norm(ref))
    assert rel < 5e-2, f"bf16 kernel relative L2 error too large: {rel}"

    print("KERNEL_OK")
</pallas_src>

<mosaic_0001>
module attributes {stable_mosaic.version = 11 : i64} {
  func.func @qkv_proj_kernel(%arg0: i32, %arg1: i32, %arg2: i32, %arg3: memref<1x8x32xf32, #tpu.memory_space<vmem>>, %arg4: memref<32x32xf32, #tpu.memory_space<vmem>>, %arg5: memref<32x32xf32, #tpu.memory_space<vmem>>, %arg6: memref<32x32xf32, #tpu.memory_space<vmem>>, %arg7: memref<1x32xf32, #tpu.memory_space<vmem>>, %arg8: memref<1x32xf32, #tpu.memory_space<vmem>>, %arg9: memref<1x32xf32, #tpu.memory_space<vmem>>, %arg10: memref<1x8x32xf32, #tpu.memory_space<vmem>>, %arg11: memref<1x8x32xf32, #tpu.memory_space<vmem>>, %arg12: memref<1x8x32xf32, #tpu.memory_space<vmem>>) attributes {dimension_semantics = [#tpu.dimension_semantics<parallel>, #tpu.dimension_semantics<parallel>, #tpu.dimension_semantics<arbitrary>], iteration_bounds = array<i64: 2, 1, 1>, scalar_prefetch = 0 : i64, scratch_operands = 0 : i64, tpu.core_type = #tpu.core_type<tc>, window_params = [{transform_indices = @transform_0, window_bounds = array<i64: 1, 8, 32>}, {transform_indices = @transform_1, window_bounds = array<i64: 32, 32>}, {transform_indices = @transform_2, window_bounds = array<i64: 32, 32>}, {transform_indices = @transform_3, window_bounds = array<i64: 32, 32>}, {transform_indices = @transform_4, window_bounds = array<i64: 1, 32>}, {transform_indices = @transform_5, window_bounds = array<i64: 1, 32>}, {transform_indices = @transform_6, window_bounds = array<i64: 1, 32>}, {transform_indices = @transform_7, window_bounds = array<i64: 1, 8, 32>}, {transform_indices = @transform_8, window_bounds = array<i64: 1, 8, 32>}, {transform_indices = @transform_9, window_bounds = array<i64: 1, 8, 32>}]} {
    %c0 = arith.constant 0 : index
    %c0_0 = arith.constant 0 : index
    %c0_1 = arith.constant 0 : index
    %0 = vector.load %arg3[%c0, %c0_0, %c0_1] : memref<1x8x32xf32, #tpu.memory_space<vmem>>, vector<1x8x32xf32>
    %1 = vector.shape_cast %0 : vector<1x8x32xf32> to vector<8x32xf32>
    %c0_2 = arith.constant 0 : index
    %c0_3 = arith.constant 0 : index
    %2 = vector.load %arg4[%c0_2, %c0_3] : memref<32x32xf32, #tpu.memory_space<vmem>>, vector<32x32xf32>
    %cst = arith.constant dense<0.000000e+00> : vector<8x32xf32>
    %3 = tpu.matmul %1, %2, %cst {dimension_numbers = #tpu.dot_dimension_numbers<[1], [0], [0], [1], [0, 0, 1, 1], [], []>} : vector<8x32xf32>, vector<32x32xf32>, vector<8x32xf32> -> vector<8x32xf32>
    %c0_4 = arith.constant 0 : index
    %c0_5 = arith.constant 0 : index
    %4 = vector.load %arg7[%c0_4, %c0_5] : memref<1x32xf32, #tpu.memory_space<vmem>>, vector<1x32xf32>
    %5 = vector.broadcast %4 : vector<1x32xf32> to vector<8x32xf32>
    %6 = arith.addf %3, %5 : vector<8x32xf32>
    %c0_6 = arith.constant 0 : index
    %c0_7 = arith.constant 0 : index
    %c0_8 = arith.constant 0 : index
    %7 = vector.load %arg10[%c0_6, %c0_7, %c0_8] : memref<1x8x32xf32, #tpu.memory_space<vmem>>, vector<1x8x32xf32>
    %8 = vector.shape_cast %7 : vector<1x8x32xf32> to vector<8x32xf32>
    %9 = vector.shape_cast %6 : vector<8x32xf32> to vector<1x8x32xf32>
    tpu.vector_store %arg10[%c0_6, %c0_7, %c0_8], %9 {strides = array<i32>} : memref<1x8x32xf32, #tpu.memory_space<vmem>>, vector<1x8x32xf32>,
    %c0_9 = arith.constant 0 : index
    %c0_10 = arith.constant 0 : index
    %10 = vector.load %arg5[%c0_9, %c0_10] : memref<32x32xf32, #tpu.memory_space<vmem>>, vector<32x32xf32>
    %cst_11 = arith.constant dense<0.000000e+00> : vector<8x32xf32>
    %11 = tpu.matmul %1, %10, %cst_11 {dimension_numbers = #tpu.dot_dimension_numbers<[1], [0], [0], [1], [0, 0, 1, 1], [], []>} : vector<8x32xf32>, vector<32x32xf32>, vector<8x32xf32> -> vector<8x32xf32>
    %c0_12 = arith.constant 0 : index
    %c0_13 = arith.constant 0 : index
    %12 = vector.load %arg8[%c0_12, %c0_13] : memref<1x32xf32, #tpu.memory_space<vmem>>, vector<1x32xf32>
    %13 = vector.broadcast %12 : vector<1x32xf32> to vector<8x32xf32>
    %14 = arith.addf %11, %13 : vector<8x32xf32>
    %c0_14 = arith.constant 0 : index
    %c0_15 = arith.constant 0 : index
    %c0_16 = arith.constant 0 : index
    %15 = vector.load %arg11[%c0_14, %c0_15, %c0_16] : memref<1x8x32xf32, #tpu.memory_space<vmem>>, vector<1x8x32xf32>
    %16 = vector.shape_cast %15 : vector<1x8x32xf32> to vector<8x32xf32>
    %17 = vector.shape_cast %14 : vector<8x32xf32> to vector<1x8x32xf32>
    tpu.vector_store %arg11[%c0_14, %c0_15, %c0_16], %17 {strides = array<i32>} : memref<1x8x32xf32, #tpu.memory_space<vmem>>, vector<1x8x32xf32>,
    %c0_17 = arith.constant 0 : index
    %c0_18 = arith.constant 0 : index
    %18 = vector.load %arg6[%c0_17, %c0_18] : memref<32x32xf32, #tpu.memory_space<vmem>>, vector<32x32xf32>
    %cst_19 = arith.constant dense<0.000000e+00> : vector<8x32xf32>
    %19 = tpu.matmul %1, %18, %cst_19 {dimension_numbers = #tpu.dot_dimension_numbers<[1], [0], [0], [1], [0, 0, 1, 1], [], []>} : vector<8x32xf32>, vector<32x32xf32>, vector<8x32xf32> -> vector<8x32xf32>
    %c0_20 = arith.constant 0 : index
    %c0_21 = arith.constant 0 : index
    %20 = vector.load %arg9[%c0_20, %c0_21] : memref<1x32xf32, #tpu.memory_space<vmem>>, vector<1x32xf32>
    %21 = vector.broadcast %20 : vector<1x32xf32> to vector<8x32xf32>
    %22 = arith.addf %19, %21 : vector<8x32xf32>
    %c0_22 = arith.constant 0 : index
    %c0_23 = arith.constant 0 : index
    %c0_24 = arith.constant 0 : index
    %23 = vector.load %arg12[%c0_22, %c0_23, %c0_24] : memref<1x8x32xf32, #tpu.memory_space<vmem>>, vector<1x8x32xf32>
    %24 = vector.shape_cast %23 : vector<1x8x32xf32> to vector<8x32xf32>
    %25 = vector.shape_cast %22 : vector<8x32xf32> to vector<1x8x32xf32>
    tpu.vector_store %arg12[%c0_22, %c0_23, %c0_24], %25 {strides = array<i32>} : memref<1x8x32xf32, #tpu.memory_space<vmem>>, vector<1x8x32xf32>,
    return
  }
  func.func @transform_0(%arg0: i32, %arg1: i32, %arg2: i32) -> (i32, i32, i32) {
    %c0_i32 = arith.constant 0 : i32
    %c0_i32_0 = arith.constant 0 : i32
    return %arg0, %arg1, %c0_i32 : i32, i32, i32
  }
  func.func @transform_1(%arg0: i32, %arg1: i32, %arg2: i32) -> (i32, i32) {
    %c0_i32 = arith.constant 0 : i32
    %c0_i32_0 = arith.constant 0 : i32
    return %c0_i32, %arg2 : i32, i32
  }
  func.func @transform_2(%arg0: i32, %arg1: i32, %arg2: i32) -> (i32, i32) {
    %c0_i32 = arith.constant 0 : i32
    %c0_i32_0 = arith.constant 0 : i32
    return %c0_i32, %arg2 : i32, i32
  }
  func.func @transform_3(%arg0: i32, %arg1: i32, %arg2: i32) -> (i32, i32) {
    %c0_i32 = arith.constant 0 : i32
    %c0_i32_0 = arith.constant 0 : i32
    return %c0_i32, %arg2 : i32, i32
  }
  func.func @transform_4(%arg0: i32, %arg1: i32, %arg2: i32) -> (i32, i32) {
    %c0_i32 = arith.constant 0 : i32
    %c0_i32_0 = arith.constant 0 : i32
    return %c0_i32, %arg2 : i32, i32
  }
  func.func @transform_5(%arg0: i32, %arg1: i32, %arg2: i32) -> (i32, i32) {
    %c0_i32 = arith.constant 0 : i32
    %c0_i32_0 = arith.constant 0 : i32
    return %c0_i32, %arg2 : i32, i32
  }
  func.func @transform_6(%arg0: i32, %arg1: i32, %arg2: i32) -> (i32, i32) {
    %c0_i32 = arith.constant 0 : i32
    %c0_i32_0 = arith.constant 0 : i32
    return %c0_i32, %arg2 : i32, i32
  }
  func.func @transform_7(%arg0: i32, %arg1: i32, %arg2: i32) -> (i32, i32, i32) {
    %c0_i32 = arith.constant 0 : i32
    return %arg0, %arg1, %arg2 : i32, i32, i32
  }
  func.func @transform_8(%arg0: i32, %arg1: i32, %arg2: i32) -> (i32, i32, i32) {
    %c0_i32 = arith.constant 0 : i32
    return %arg0, %arg1, %arg2 : i32, i32, i32
  }
  func.func @transform_9(%arg0: i32, %arg1: i32, %arg2: i32) -> (i32, i32, i32) {
    %c0_i32 = arith.constant 0 : i32
    return %arg0, %arg1, %arg2 : i32, i32, i32
  }
}

</mosaic_0001>

<llo_original>
// kernel: tpu_custom_call.1
$region0: #{tpu_custom_call.1}
  #allocation0 [shape = 'u32[]', space=smem, size = 0x4, offset = 0x4, fixed_abs, tag = 'smem constant byte address 0x4 - core index']
  #allocation1 [shape = 'u32[72,128]{1,0:T(1,128)}', space=vmem, size = 0x9000, scoped, tag = 'internal scratch']
  %s0 = inlined_call_operand.hbm [shape: f32[2,8,32], index: 0, kind: input, shape index: {}]
  %s1 = inlined_call_operand.hbm [shape: f32[32,32], index: 1, kind: input, shape index: {}]
  %s2 = inlined_call_operand.hbm [shape: f32[32,32], index: 2, kind: input, shape index: {}]
  %s3 = inlined_call_operand.hbm [shape: f32[32,32], index: 3, kind: input, shape index: {}]
  %s4 = inlined_call_operand.vmem [shape: f32[1,32], index: 4, kind: input, shape index: {}]
  %s5 = inlined_call_operand.vmem [shape: f32[1,32], index: 5, kind: input, shape index: {}]
  %s6 = inlined_call_operand.vmem [shape: f32[1,32], index: 6, kind: input, shape index: {}]
  %s7 = inlined_call_operand.hbm [shape: f32[2,8,32], index: 7, kind: output, shape index: {0}]
  %s8 = inlined_call_operand.hbm [shape: f32[2,8,32], index: 8, kind: output, shape index: {1}]
  %s9 = inlined_call_operand.hbm [shape: f32[2,8,32], index: 9, kind: output, shape index: {2}]
  %10 = xla_tuple %s7, %s8, %s9
  %s11 = sld [smem:[#allocation0]]
  $region93: #{tpu_custom_call.1} parent=0
    _
  %s13 = ssub.s32 1, %s11
  %s14 = scalar_select 0, %s13, %s11
  $region1: #{tpu_custom_call.1} parent=0
    #allocation2 [shape = 'u8[8192]{0}', space=vmem, size = 0x2000, scoped, tag = 'input window, operand 0']
    #allocation3 [shape = 's32[2]{0}', space=sflag, size = 0x8, scoped, tag = 'scoped memory for tpu_custom_call.1']
    #allocation4 [shape = 's32[2]{0}', space=sflag, size = 0x8, scoped, tag = 'scoped memory for tpu_custom_call.1']
    #allocation5 [shape = 'u8[16384]{0}', space=vmem, size = 0x4000, scoped, tag = 'input window, operand 1, single buffered']
    #allocation6 [shape = 's32[1]{0}', space=sflag, size = 0x4, scoped, tag = 'scoped memory for tpu_custom_call.1']
    #allocation7 [shape = 'u8[16384]{0}', space=vmem, size = 0x4000, scoped, tag = 'input window, operand 2, single buffered']
    #allocation8 [shape = 'u8[16384]{0}', space=vmem, size = 0x4000, scoped, tag = 'input window, operand 3, single buffered']
    #allocation9 [shape = 's32[1]{0}', space=sflag, size = 0x4, scoped, tag = 'scoped memory for tpu_custom_call.1']
    #allocation10 [shape = 'u8[8192]{0}', space=vmem, size = 0x2000, scoped, tag = 'output window, operand 0']
    #allocation11 [shape = 'u8[8192]{0}', space=vmem, size = 0x2000, scoped, tag = 'output window, operand 1']
    #allocation12 [shape = 's32[2]{0}', space=sflag, size = 0x8, scoped, tag = 'scoped memory for tpu_custom_call.1']
    #allocation13 [shape = 'u8[8192]{0}', space=vmem, size = 0x2000, scoped, tag = 'output window, operand 2']
    %15 = vsyncpa [#allocation3], 0
    %s16 = scalar_lea.sflag [#allocation3], 1
    %17 = vsyncpa %s16, 0
    %18 = vsyncpa [#allocation6], 0
    %19 = vsyncpa [#allocation9], 0
    %20 = vsyncpa [#allocation4], 0
    %s21 = scalar_lea.sflag [#allocation4], 1
    %22 = vsyncpa %s21, 0
    %23 = vsyncpa [#allocation12], 0
    %s24 = scalar_lea.sflag [#allocation12], 1
    %25 = vsyncpa %s24, 0
    loop: start=0, step=1, limit=4
    $region2: #{tpu_custom_call.1} parent=1 // loop_pre_header
      _
    $region3: #{tpu_custom_call.1} parent=1 // loop_header
      %s27 = sphi 0, %s31
      %p28 = scmp.ge.s32.totalorder %s27, 4
      %s34 = sphi 0, %s53
      %s35 = sphi 0, %s49
      %s36 = sphi 0, %s45
      %s37 = sphi 0, %s34
      %s38 = sphi 0, %s35
      %s39 = sphi 0, %s36
      %s40 = sphi 0, %s37
      %s41 = sphi 0, %s38
      %s42 = sphi 0, %s39
      %s58 = sphi 0, %s60
      %s61 = sphi 0, %s58
      %s62 = sphi 0, %s61
      %s78 = sphi 0, %s62
      %s84 = sphi 0, %s86
      %s87 = sphi 0, %s84
      %s88 = sphi 0, %s87
      %s104 = sphi 0, %s88
      %s110 = sphi 0, %s112
      %s113 = sphi 0, %s110
      %s114 = sphi 0, %s113
      %s130 = sphi 0, %s114
      %s136 = sphi 0, %s138
      %s139 = sphi 0, %s136
      %s140 = sphi 0, %s139
      %s156 = sphi 0, %s140
      %s162 = sphi 0, %s164
      %s165 = sphi 0, %s162
      %s166 = sphi 0, %s165
      %s182 = sphi 0, %s166
      %s188 = sphi 0, %s190
      %s191 = sphi 0, %s188
      %s192 = sphi 0, %s191
      %s208 = sphi 0, %s192
      %s214 = sphi 0, %s216
      %s217 = sphi 0, %s214
      %s218 = sphi 0, %s217
      %s234 = sphi 0, %s218
      %s244 = sphi 0, %s246
      %s247 = sphi 0, %s244
      %s248 = sphi 0, %s247
      %s264 = sphi 0, %s248
      %s274 = sphi 0, %s276
      %s277 = sphi 0, %s274
      %s278 = sphi 0, %s277
      %s294 = sphi 0, %s278
      %s304 = sphi 0, %s306
      %s307 = sphi 0, %s304
      %s308 = sphi 0, %s307
      %s324 = sphi 0, %s308
    $region4: #{tpu_custom_call.1} parent=1 // loop_header_branch
      %30 = sbr.rel (%p28) target = $region8
    $region5: #{tpu_custom_call.1} parent=1 // loop_body
      %s32 = ssub.s32 %s27, 1
      %s33 = ssub.s32 %s27, 2
      %s43 = sadd.s32 1, %s36
      %p44 = scmp.ge.s32.totalorder %s43, 1
      %s45 = scalar_select %p44, 0, %s43
      %s46 = sadd.s32 1, %s35
      %s47 = scalar_select %p44, %s46, %s35
      %p48 = scmp.ge.s32.totalorder %s47, 1
      %s49 = scalar_select %p48, 0, %s47
      %s50 = sadd.s32 1, %s34
      %s51 = scalar_select %p48, %s50, %s34
      %p52 = scmp.ge.s32.totalorder %s51, 2
      %s53 = scalar_select %p52, 0, %s51
      %s54 = ssub.s32 %s34, %s53
      %s55 = ssub.s32 %s35, %s49
      %s56 = sor.u32 %s54, %s55
      %p57 = scmp.eq.s32.totalorder %s56, 0
      %s59 = sadd.s32 %s58, 1
      %s60 = scalar_select %p57, %s58, %s59
      %p63 = pneg %p57
      %p64 = scmp.eq.s32.totalorder %s27, 1
      %p65 = por %p63, %p64
      %p66 = scmp.ne.s32.totalorder %s58, %s61
      %p67 = scmp.eq.s32.totalorder %s27, 0
      %p68 = por %p66, %p67
      %p69 = scmp.ne.s32.totalorder %s58, %s61
      %p70 = scmp.eq.s32.totalorder %s32, 1
      %p71 = por %p69, %p70
      %p72 = scmp.ne.s32.totalorder %s61, %s62
      %p73 = scmp.eq.s32.totalorder %s32, 0
      %p74 = por %p72, %p73
      %p75 = scmp.ne.s32.totalorder %s61, %s62
      %p76 = scmp.eq.s32.totalorder %s33, 1
      %p77 = por %p75, %p76
      %p79 = scmp.ne.s32.totalorder %s62, %s78
      %p80 = scmp.eq.s32.totalorder %s33, 0
      %p81 = por %p79, %p80
      %s82 = ssub.s32 %s36, %s45
      %p83 = scmp.eq.s32.totalorder %s82, 0
      %s85 = sadd.s32 %s84, 1
      %s86 = scalar_select %p83, %s84, %s85
      %p89 = pneg %p83
      %p90 = scmp.eq.s32.totalorder %s27, 1
      %p91 = por %p89, %p90
      %p92 = scmp.ne.s32.totalorder %s84, %s87
      %p93 = scmp.eq.s32.totalorder %s27, 0
      %p94 = por %p92, %p93
      %p95 = scmp.ne.s32.totalorder %s84, %s87
      %p96 = scmp.eq.s32.totalorder %s32, 1
      %p97 = por %p95, %p96
      %p98 = scmp.ne.s32.totalorder %s87, %s88
      %p99 = scmp.eq.s32.totalorder %s32, 0
      %p100 = por %p98, %p99
      %p101 = scmp.ne.s32.totalorder %s87, %s88
      %p102 = scmp.eq.s32.totalorder %s33, 1
      %p103 = por %p101, %p102
      %p105 = scmp.ne.s32.totalorder %s88, %s104
      %p106 = scmp.eq.s32.totalorder %s33, 0
      %p107 = por %p105, %p106
      %s108 = ssub.s32 %s36, %s45
      %p109 = scmp.eq.s32.totalorder %s108, 0
      %s111 = sadd.s32 %s110, 1
      %s112 = scalar_select %p109, %s110, %s111
      %p115 = pneg %p109
      %p116 = scmp.eq.s32.totalorder %s27, 1
      %p117 = por %p115, %p116
      %p118 = scmp.ne.s32.totalorder %s110, %s113
      %p119 = scmp.eq.s32.totalorder %s27, 0
      %p120 = por %p118, %p119
      %p121 = scmp.ne.s32.totalorder %s110, %s113
      %p122 = scmp.eq.s32.totalorder %s32, 1
      %p123 = por %p121, %p122
      %p124 = scmp.ne.s32.totalorder %s113, %s114
      %p125 = scmp.eq.s32.totalorder %s32, 0
      %p126 = por %p124, %p125
      %p127 = scmp.ne.s32.totalorder %s113, %s114
      %p128 = scmp.eq.s32.totalorder %s33, 1
      %p129 = por %p127, %p128
      %p131 = scmp.ne.s32.totalorder %s114, %s130
      %p132 = scmp.eq.s32.totalorder %s33, 0
      %p133 = por %p131, %p132
      %s134 = ssub.s32 %s36, %s45
      %p135 = scmp.eq.s32.totalorder %s134, 0
      %s137 = sadd.s32 %s136, 1
      %s138 = scalar_select %p135, %s136, %s137
      %p141 = pneg %p135
      %p142 = scmp.eq.s32.totalorder %s27, 1
      %p143 = por %p141, %p142
      %p144 = scmp.ne.s32.totalorder %s136, %s139
      %p145 = scmp.eq.s32.totalorder %s27, 0
      %p146 = por %p144, %p145
      %p147 = scmp.ne.s32.totalorder %s136, %s139
      %p148 = scmp.eq.s32.totalorder %s32, 1
      %p149 = por %p147, %p148
      %p150 = scmp.ne.s32.totalorder %s139, %s140
      %p151 = scmp.eq.s32.totalorder %s32, 0
      %p152 = por %p150, %p151
      %p153 = scmp.ne.s32.totalorder %s139, %s140
      %p154 = scmp.eq.s32.totalorder %s33, 1
      %p155 = por %p153, %p154
      %p157 = scmp.ne.s32.totalorder %s140, %s156
      %p158 = scmp.eq.s32.totalorder %s33, 0
      %p159 = por %p157, %p158
      %s160 = ssub.s32 %s36, %s45
      %p161 = scmp.eq.s32.totalorder %s160, 0
      %s163 = sadd.s32 %s162, 1
      %s164 = scalar_select %p161, %s162, %s163
      %p167 = pneg %p161
      %p168 = scmp.eq.s32.totalorder %s27, 1
      %p169 = por %p167, %p168
      %p170 = scmp.ne.s32.totalorder %s162, %s165
      %p171 = scmp.eq.s32.totalorder %s27, 0
      %p172 = por %p170, %p171
      %p173 = scmp.ne.s32.totalorder %s162, %s165
      %p174 = scmp.eq.s32.totalorder %s32, 1
      %p175 = por %p173, %p174
      %p176 = scmp.ne.s32.totalorder %s165, %s166
      %p177 = scmp.eq.s32.totalorder %s32, 0
      %p178 = por %p176, %p177
      %p179 = scmp.ne.s32.totalorder %s165, %s166
      %p180 = scmp.eq.s32.totalorder %s33, 1
      %p181 = por %p179, %p180
      %p183 = scmp.ne.s32.totalorder %s166, %s182
      %p184 = scmp.eq.s32.totalorder %s33, 0
      %p185 = por %p183, %p184
      %s186 = ssub.s32 %s36, %s45
      %p187 = scmp.eq.s32.totalorder %s186, 0
      %s189 = sadd.s32 %s188, 1
      %s190 = scalar_select %p187, %s188, %s189
      %p193 = pneg %p187
      %p194 = scmp.eq.s32.totalorder %s27, 1
      %p195 = por %p193, %p194
      %p196 = scmp.ne.s32.totalorder %s188, %s191
      %p197 = scmp.eq.s32.totalorder %s27, 0
      %p198 = por %p196, %p197
      %p199 = scmp.ne.s32.totalorder %s188, %s191
      %p200 = scmp.eq.s32.totalorder %s32, 1
      %p201 = por %p199, %p200
      %p202 = scmp.ne.s32.totalorder %s191, %s192
      %p203 = scmp.eq.s32.totalorder %s32, 0
      %p204 = por %p202, %p203
      %p205 = scmp.ne.s32.totalorder %s191, %s192
      %p206 = scmp.eq.s32.totalorder %s33, 1
      %p207 = por %p205, %p206
      %p209 = scmp.ne.s32.totalorder %s192, %s208
      %p210 = scmp.eq.s32.totalorder %s33, 0
      %p211 = por %p209, %p210
      %s212 = ssub.s32 %s36, %s45
      %p213 = scmp.eq.s32.totalorder %s212, 0
      %s215 = sadd.s32 %s214, 1
      %s216 = scalar_select %p213, %s214, %s215
      %p219 = pneg %p213
      %p220 = scmp.eq.s32.totalorder %s27, 1
      %p221 = por %p219, %p220
      %p222 = scmp.ne.s32.totalorder %s214, %s217
      %p223 = scmp.eq.s32.totalorder %s27, 0
      %p224 = por %p222, %p223
      %p225 = scmp.ne.s32.totalorder %s214, %s217
      %p226 = scmp.eq.s32.totalorder %s32, 1
      %p227 = por %p225, %p226
      %p228 = scmp.ne.s32.totalorder %s217, %s218
      %p229 = scmp.eq.s32.totalorder %s32, 0
      %p230 = por %p228, %p229
      %p231 = scmp.ne.s32.totalorder %s217, %s218
      %p232 = scmp.eq.s32.totalorder %s33, 1
      %p233 = por %p231, %p232
      %p235 = scmp.ne.s32.totalorder %s218, %s234
      %p236 = scmp.eq.s32.totalorder %s33, 0
      %p237 = por %p235, %p236
      %s238 = ssub.s32 %s34, %s53
      %s239 = ssub.s32 %s35, %s49
      %s240 = sor.u32 %s238, %s239
      %s241 = ssub.s32 %s36, %s45
      %s242 = sor.u32 %s240, %s241
      %p243 = scmp.eq.s32.totalorder %s242, 0
      %s245 = sadd.s32 %s244, 1
      %s246 = scalar_select %p243, %s244, %s245
      %p249 = pneg %p243
      %p250 = scmp.eq.s32.totalorder %s27, 1
      %p251 = por %p249, %p250
      %p252 = scmp.ne.s32.totalorder %s244, %s247
      %p253 = scmp.eq.s32.totalorder %s27, 0
      %p254 = por %p252, %p253
      %p255 = scmp.ne.s32.totalorder %s244, %s247
      %p256 = scmp.eq.s32.totalorder %s32, 1
      %p257 = por %p255, %p256
      %p258 = scmp.ne.s32.totalorder %s247, %s248
      %p259 = scmp.eq.s32.totalorder %s32, 0
      %p260 = por %p258, %p259
      %p261 = scmp.ne.s32.totalorder %s247, %s248
      %p262 = scmp.eq.s32.totalorder %s33, 1
      %p263 = por %p261, %p262
      %p265 = scmp.ne.s32.totalorder %s248, %s264
      %p266 = scmp.eq.s32.totalorder %s33, 0
      %p267 = por %p265, %p266
      %s268 = ssub.s32 %s34, %s53
      %s269 = ssub.s32 %s35, %s49
      %s270 = sor.u32 %s268, %s269
      %s271 = ssub.s32 %s36, %s45
      %s272 = sor.u32 %s270, %s271
      %p273 = scmp.eq.s32.totalorder %s272, 0
      %s275 = sadd.s32 %s274, 1
      %s276 = scalar_select %p273, %s274, %s275
      %p279 = pneg %p273
      %p280 = scmp.eq.s32.totalorder %s27, 1
      %p281 = por %p279, %p280
      %p282 = scmp.ne.s32.totalorder %s274, %s277
      %p283 = scmp.eq.s32.totalorder %s27, 0
      %p284 = por %p282, %p283
      %p285 = scmp.ne.s32.totalorder %s274, %s277
      %p286 = scmp.eq.s32.totalorder %s32, 1
      %p287 = por %p285, %p286
      %p288 = scmp.ne.s32.totalorder %s277, %s278
      %p289 = scmp.eq.s32.totalorder %s32, 0
      %p290 = por %p288, %p289
      %p291 = scmp.ne.s32.totalorder %s277, %s278
      %p292 = scmp.eq.s32.totalorder %s33, 1
      %p293 = por %p291, %p292
      %p295 = scmp.ne.s32.totalorder %s278, %s294
      %p296 = scmp.eq.s32.totalorder %s33, 0
      %p297 = por %p295, %p296
      %s298 = ssub.s32 %s34, %s53
      %s299 = ssub.s32 %s35, %s49
      %s300 = sor.u32 %s298, %s299
      %s301 = ssub.s32 %s36, %s45
      %s302 = sor.u32 %s300, %s301
      %p303 = scmp.eq.s32.totalorder %s302, 0
      %s305 = sadd.s32 %s304, 1
      %s306 = scalar_select %p303, %s304, %s305
      %p309 = pneg %p303
      %p310 = scmp.eq.s32.totalorder %s27, 1
      %p311 = por %p309, %p310
      %p312 = scmp.ne.s32.totalorder %s304, %s307
      %p313 = scmp.eq.s32.totalorder %s27, 0
      %p314 = por %p312, %p313
      %p315 = scmp.ne.s32.totalorder %s304, %s307
      %p316 = scmp.eq.s32.totalorder %s32, 1
      %p317 = por %p315, %p316
      %p318 = scmp.ne.s32.totalorder %s307, %s308
      %p319 = scmp.eq.s32.totalorder %s32, 0
      %p320 = por %p318, %p319
      %p321 = scmp.ne.s32.totalorder %s307, %s308
      %p322 = scmp.eq.s32.totalorder %s33, 1
      %p323 = por %p321, %p322
      %p325 = scmp.ne.s32.totalorder %s308, %s324
      %p326 = scmp.eq.s32.totalorder %s33, 0
      %p327 = por %p325, %p326
      %p328 = scmp.le.s32.totalorder 1, %s27
      %p329 = scmp.lt.s32.totalorder %s27, 3
      %p330 = pnand %p328, %p329
      %p331 = pneg %p330
      // Predicated region
      $region9: #{tpu_custom_call.1} parent=5 // pred_check
        _
      $region10: #{tpu_custom_call.1} parent=5 // pred_check_branch
        %333 = sbr.rel (%p330) target = $region12
      $region11: #{tpu_custom_call.1} parent=5 // pred_region
        %s334 = ssub.s32 %s27, 1
        // Predicated region
        $region13: #{tpu_custom_call.1} parent=11 // pred_check
          %p335 = pneg %p100
        $region14: #{tpu_custom_call.1} parent=11 // pred_check_branch
          %337 = sbr.rel (%p335) target = $region16
        $region15: #{tpu_custom_call.1} parent=11 // pred_region
          %339 = vsyncadd [#allocation6], 0
          %s340 = smul.addr %s39, 8
          %s341 = scalar_lea.hbm %s1, %s340
          %s342 = sshll.u32 %s341, 4
          %s343 = int_to_ptr.hbm [resolvable:$true] %s342
          %s344 = sshll.u32 [#allocation5], 4
          %s345 = int_to_ptr.vmem [resolvable:$true] %s344
          %350 = dma.hbm_to_vmem [thread:$0]  %s343, 512, %s345, [#allocation6], 128, 128, 8
        $region16: #{tpu_custom_call.1} parent=11 // pred_fallthru
          _
        // Predicated region
        $region17: #{tpu_custom_call.1} parent=11 // pred_check
          %p351 = pneg %p126
        $region18: #{tpu_custom_call.1} parent=11 // pred_check_branch
          %353 = sbr.rel (%p351) target = $region20
        $region19: #{tpu_custom_call.1} parent=11 // pred_region
          %355 = vsyncadd [#allocation6], 0
          %s356 = smul.addr %s39, 8
          %s357 = scalar_lea.hbm %s2, %s356
          %s358 = sshll.u32 %s357, 4
          %s359 = int_to_ptr.hbm [resolvable:$true] %s358
          %s360 = sshll.u32 [#allocation7], 4
          %s361 = int_to_ptr.vmem [resolvable:$true] %s360
          %366 = dma.hbm_to_vmem [thread:$0]  %s359, 512, %s361, [#allocation6], 128, 128, 8
        $region20: #{tpu_custom_call.1} parent=11 // pred_fallthru
          _
        // Predicated region
        $region21: #{tpu_custom_call.1} parent=11 // pred_check
          %p367 = pneg %p152
        $region22: #{tpu_custom_call.1} parent=11 // pred_check_branch
          %369 = sbr.rel (%p367) target = $region24
        $region23: #{tpu_custom_call.1} parent=11 // pred_region
          %371 = vsyncadd [#allocation9], 0
          %s372 = smul.addr %s39, 8
          %s373 = scalar_lea.hbm %s3, %s372
          %s374 = sshll.u32 %s373, 4
          %s375 = int_to_ptr.hbm [resolvable:$true] %s374
          %s376 = sshll.u32 [#allocation8], 4
          %s377 = int_to_ptr.vmem [resolvable:$true] %s376
          %382 = dma.hbm_to_vmem [thread:$0]  %s375, 512, %s377, [#allocation9], 128, 128, 8
        $region24: #{tpu_custom_call.1} parent=11 // pred_fallthru
          _
        // Predicated region
        $region25: #{tpu_custom_call.1} parent=11 // pred_check
          %p383 = pneg %p178
        $region26: #{tpu_custom_call.1} parent=11 // pred_check_branch
          %385 = sbr.rel (%p383) target = $region28
        $region27: #{tpu_custom_call.1} parent=11 // pred_region
          %p386 = scmp.lt.s32.totalorder %s39, 0
          %s387 = scalar_select %p386, %s39, 0
          %s388 = scalar_lea.vmem %s4, %s387
        $region28: #{tpu_custom_call.1} parent=11 // pred_fallthru
          _
        // Predicated region
        $region29: #{tpu_custom_call.1} parent=11 // pred_check
          %p389 = pneg %p204
        $region30: #{tpu_custom_call.1} parent=11 // pred_check_branch
          %391 = sbr.rel (%p389) target = $region32
        $region31: #{tpu_custom_call.1} parent=11 // pred_region
          %p392 = scmp.lt.s32.totalorder %s39, 0
          %s393 = scalar_select %p392, %s39, 0
          %s394 = scalar_lea.vmem %s5, %s393
        $region32: #{tpu_custom_call.1} parent=11 // pred_fallthru
          _
        // Predicated region
        $region33: #{tpu_custom_call.1} parent=11 // pred_check
          %p395 = pneg %p230
        $region34: #{tpu_custom_call.1} parent=11 // pred_check_branch
          %397 = sbr.rel (%p395) target = $region36
        $region35: #{tpu_custom_call.1} parent=11 // pred_region
          %p398 = scmp.lt.s32.totalorder %s39, 0
          %s399 = scalar_select %p398, %s39, 0
          %s400 = scalar_lea.vmem %s6, %s399
        $region36: #{tpu_custom_call.1} parent=11 // pred_fallthru
          _
      $region12: #{tpu_custom_call.1} parent=5 // pred_fallthru
        _
      %p401 = scmp.lt.s32.totalorder %s27, 2
      // Predicated region
      $region37: #{tpu_custom_call.1} parent=5 // pred_check
        %p402 = pneg %p401
      $region38: #{tpu_custom_call.1} parent=5 // pred_check_branch
        %404 = sbr.rel (%p402) target = $region40
      $region39: #{tpu_custom_call.1} parent=5 // pred_region
        // Predicated region
        $region41: #{tpu_custom_call.1} parent=39 // pred_check
          %p405 = pneg %p68
        $region42: #{tpu_custom_call.1} parent=39 // pred_check_branch
          %407 = sbr.rel (%p405) target = $region44
        $region43: #{tpu_custom_call.1} parent=39 // pred_region
          %s408 = sand.u32 %s58, 1
          %s409 = scalar_lea.sflag [#allocation3], %s408
          %s410 = sand.u32 %s58, 1
          %s411 = smul.addr %s410, 8
          %s412 = scalar_lea.vmem [#allocation2], %s411
          %414 = vsyncadd %s409, 0
          %s415 = sadd.s32 %s35, %s34
          %s416 = smul.addr %s415, 8
          %s417 = scalar_lea.hbm %s0, %s416
          %s419 = sshll.u32 %s417, 4
          %s420 = int_to_ptr.hbm [resolvable:$true] %s419
          %s421 = sshll.u32 %s412, 4
          %s422 = int_to_ptr.vmem [resolvable:$true] %s421
          %424 = dma.hbm_to_vmem [thread:$0]  %s420, 128, %s422, %s409
        $region44: #{tpu_custom_call.1} parent=39 // pred_fallthru
          _
      $region40: #{tpu_custom_call.1} parent=5 // pred_fallthru
        _
      %p425 = scmp.le.s32.totalorder 1, %s27
      %p426 = scmp.lt.s32.totalorder %s27, 3
      %p427 = pnand %p425, %p426
      %p428 = pneg %p427
      // Predicated region
      $region45: #{tpu_custom_call.1} parent=5 // pred_check
        _
      $region46: #{tpu_custom_call.1} parent=5 // pred_check_branch
        %430 = sbr.rel (%p427) target = $region48
      $region47: #{tpu_custom_call.1} parent=5 // pred_region
        %s431 = ssub.s32 %s27, 1
        %s432 = sand.u32 %s61, 1
        %s433 = scalar_lea.sflag [#allocation3], %s432
        %s434 = sand.u32 %s61, 1
        %s435 = smul.addr %s434, 8
        %s436 = scalar_lea.vmem [#allocation2], %s435
        // Predicated region
        $region49: #{tpu_custom_call.1} parent=47 // pred_check
          %p437 = pneg %p74
        $region50: #{tpu_custom_call.1} parent=47 // pred_check_branch
          %439 = sbr.rel (%p437) target = $region52
        $region51: #{tpu_custom_call.1} parent=47 // pred_region
          %441 = dma.done %s433, 128
        $region52: #{tpu_custom_call.1} parent=47 // pred_fallthru
          _
        // Predicated region
        $region53: #{tpu_custom_call.1} parent=47 // pred_check
          %p442 = pneg %p100
        $region54: #{tpu_custom_call.1} parent=47 // pred_check_branch
          %444 = sbr.rel (%p442) target = $region56
        $region55: #{tpu_custom_call.1} parent=47 // pred_region
          %446 = dma.done [#allocation6], 512
        $region56: #{tpu_custom_call.1} parent=47 // pred_fallthru
          _
        // Predicated region
        $region57: #{tpu_custom_call.1} parent=47 // pred_check
          %p447 = pneg %p126
        $region58: #{tpu_custom_call.1} parent=47 // pred_check_branch
          %449 = sbr.rel (%p447) target = $region60
        $region59: #{tpu_custom_call.1} parent=47 // pred_region
          %451 = dma.done [#allocation6], 512
        $region60: #{tpu_custom_call.1} parent=47 // pred_fallthru
          _
        // Predicated region
        $region61: #{tpu_custom_call.1} parent=47 // pred_check
          %p452 = pneg %p152
        $region62: #{tpu_custom_call.1} parent=47 // pred_check_branch
          %454 = sbr.rel (%p452) target = $region64
        $region63: #{tpu_custom_call.1} parent=47 // pred_region
          %456 = dma.done [#allocation9], 512
        $region64: #{tpu_custom_call.1} parent=47 // pred_fallthru
          _
        %s457 = sand.u32 %s61, 1
        %s458 = scalar_lea.sflag [#allocation3], %s457
        %s459 = sand.u32 %s61, 1
        %s460 = smul.addr %s459, 8
        %s461 = scalar_lea.vmem [#allocation2], %s460
        %p462 = pneg %p74
        %p463 = pneg %p71
        %p464 = pneg %p100
        %p465 = pneg %p97
        %p466 = pneg %p126
        %p467 = pneg %p123
        %p468 = pneg %p152
        %p469 = pneg %p149
        %p470 = scmp.lt.s32.totalorder %s39, 0
        %s471 = scalar_select %p470, %s39, 0
        %s472 = scalar_lea.vmem %s4, %s471
        %p473 = pneg %p178
        %p474 = pneg %p175
        %p475 = scmp.lt.s32.totalorder %s39, 0
        %s476 = scalar_select %p475, %s39, 0
        %s477 = scalar_lea.vmem %s5, %s476
        %p478 = pneg %p204
        %p479 = pneg %p201
        %p480 = scmp.lt.s32.totalorder %s39, 0
        %s481 = scalar_select %p480, %s39, 0
        %s482 = scalar_lea.vmem %s6, %s481
        %p483 = pneg %p230
        %p484 = pneg %p227
        %p485 = pneg %p260
        %p486 = pneg %p257
        %s487 = sand.u32 %s247, 1
        %s488 = scalar_lea.sflag [#allocation4], %s487
        %s489 = sand.u32 %s247, 1
        %s490 = smul.addr %s489, 8
        %s491 = scalar_lea.vmem [#allocation10], %s490
        %p492 = pneg %p290
        %p493 = pneg %p287
        %s494 = sand.u32 %s32, 1
        %s495 = scalar_lea.sflag [#allocation12], %s494
        %s496 = sand.u32 %s277, 1
        %s497 = smul.addr %s496, 8
        %s498 = scalar_lea.vmem [#allocation11], %s497
        %p499 = pneg %p320
        %p500 = pneg %p317
        %s501 = sand.u32 %s32, 1
        %s502 = scalar_lea.sflag [#allocation12], %s501
        %s503 = sand.u32 %s307, 1
        %s504 = smul.addr %s503, 8
        %s505 = scalar_lea.vmem [#allocation13], %s504
        %p506 = scmp.lt.s32.totalorder %s39, 0
        %s507 = scalar_select %p506, %s39, 0
        %s508 = scalar_lea.vmem %s4, %s507
        %p509 = scmp.lt.s32.totalorder %s39, 0
        %s510 = scalar_select %p509, %s39, 0
        %s511 = scalar_lea.vmem %s5, %s510
        %p512 = scmp.lt.s32.totalorder %s39, 0
        %s513 = scalar_select %p512, %s39, 0
        %s514 = scalar_lea.vmem %s6, %s513
        %v515 = vld [vmem:[%s436] sm:$0xff]
        %v516 = vld [vmem:[#allocation5] sm:$0xff]
        %v517 = vld [vmem:[#allocation5 + $0x8] sm:$0xff]
        %v518 = vld [vmem:[#allocation5 + $0x10] sm:$0xff]
        %v519 = vld [vmem:[#allocation5 + $0x18] sm:$0xff]
        %v520 = vld [vmem:[%s508] sm:$0x1]
        %v522 = vperm.slane %v520, 0
        %vm524 = vcmask 261120
        %v526 = vsel %vm524, %v515, 0
        %528 = vmatpush.msra.mxu0 0.0
        %529 = vmatpush.msra.mxu0 0.0
        %530 = vmatpush.msra.mxu0 0.0
        %531 = vmatpush.msra.mxu0 0.0
        %532 = vmatpush.msra.mxu0 0.0
        %533 = vmatpush.msra.mxu0 0.0
        %534 = vmatpush.msra.mxu0 0.0
        %535 = vmatpush.msra.mxu0 0.0
        %536 = vmatpush.msra.mxu0 0.0
        %537 = vmatpush.msra.mxu0 0.0
        %538 = vmatpush.msra.mxu0 0.0
        %539 = vmatpush.msra.mxu0 0.0
        %540 = vmatpush.msra.mxu0 %v519
        %541 = vmatpush.msra.mxu0 %v518
        %542 = vmatpush.msra.mxu0 %v517
        %543 = vmatpush.msra.mxu0 %v516
        %544 = vmatmul.f32.gmra.mxu0 %v526
        %v545 = vpop.f32.mrf.mxu0
        %v546 = vadd.f32 %v522, %v545
        %547 = vdwg.mxu0
        %548 = vst.msk [vmem:[%s491] sm:$0xff] %vm524, %v546
        %v549 = vld [vmem:[#allocation7] sm:$0xff]
        %v550 = vld [vmem:[#allocation7 + $0x8] sm:$0xff]
        %v551 = vld [vmem:[#allocation7 + $0x10] sm:$0xff]
        %v552 = vld [vmem:[#allocation7 + $0x18] sm:$0xff]
        %v553 = vld [vmem:[%s511] sm:$0x1]
        %v555 = vperm.slane %v553, 0
        %557 = vmatpush.msra.mxu0 0.0
        %558 = vmatpush.msra.mxu0 0.0
        %559 = vmatpush.msra.mxu0 0.0
        %560 = vmatpush.msra.mxu0 0.0
        %561 = vmatpush.msra.mxu0 0.0
        %562 = vmatpush.msra.mxu0 0.0
        %563 = vmatpush.msra.mxu0 0.0
        %564 = vmatpush.msra.mxu0 0.0
        %565 = vmatpush.msra.mxu0 0.0
        %566 = vmatpush.msra.mxu0 0.0
        %567 = vmatpush.msra.mxu0 0.0
        %568 = vmatpush.msra.mxu0 0.0
        %569 = vmatpush.msra.mxu0 %v552
        %570 = vmatpush.msra.mxu0 %v551
        %571 = vmatpush.msra.mxu0 %v550
        %572 = vmatpush.msra.mxu0 %v549
        %573 = vmatmul.f32.gmra.mxu0 %v526
        %v574 = vpop.f32.mrf.mxu0
        %v575 = vadd.f32 %v555, %v574
        %576 = vdwg.mxu0
        %577 = vst.msk [vmem:[%s498] sm:$0xff] %vm524, %v575
        %v578 = vld [vmem:[#allocation8] sm:$0xff]
        %v579 = vld [vmem:[#allocation8 + $0x8] sm:$0xff]
        %v580 = vld [vmem:[#allocation8 + $0x10] sm:$0xff]
        %v581 = vld [vmem:[#allocation8 + $0x18] sm:$0xff]
        %v582 = vld [vmem:[%s514] sm:$0x1]
        %v584 = vperm.slane %v582, 0
        %586 = vmatpush.msra.mxu0 0.0
        %587 = vmatpush.msra.mxu0 0.0
        %588 = vmatpush.msra.mxu0 0.0
        %589 = vmatpush.msra.mxu0 0.0
        %590 = vmatpush.msra.mxu0 0.0
        %591 = vmatpush.msra.mxu0 0.0
        %592 = vmatpush.msra.mxu0 0.0
        %593 = vmatpush.msra.mxu0 0.0
        %594 = vmatpush.msra.mxu0 0.0
        %595 = vmatpush.msra.mxu0 0.0
        %596 = vmatpush.msra.mxu0 0.0
        %597 = vmatpush.msra.mxu0 0.0
        %598 = vmatpush.msra.mxu0 %v581
        %599 = vmatpush.msra.mxu0 %v580
        %600 = vmatpush.msra.mxu0 %v579
        %601 = vmatpush.msra.mxu0 %v578
        %602 = vmatmul.f32.gmra.mxu0 %v526
        %v603 = vpop.f32.mrf.mxu0
        %v604 = vadd.f32 %v584, %v603
        %605 = vdwg.mxu0
        %606 = vst.msk [vmem:[%s505] sm:$0xff] %vm524, %v604
        %s607 = sand.u32 %s247, 1
        %s608 = scalar_lea.sflag [#allocation4], %s607
        %s609 = sand.u32 %s247, 1
        %s610 = smul.addr %s609, 8
        %s611 = scalar_lea.vmem [#allocation10], %s610
        %s612 = sand.u32 %s32, 1
        %s613 = scalar_lea.sflag [#allocation12], %s612
        %s614 = sand.u32 %s277, 1
        %s615 = smul.addr %s614, 8
        %s616 = scalar_lea.vmem [#allocation11], %s615
        %s617 = sand.u32 %s32, 1
        %s618 = scalar_lea.sflag [#allocation12], %s617
        %s619 = sand.u32 %s307, 1
        %s620 = smul.addr %s619, 8
        %s621 = scalar_lea.vmem [#allocation13], %s620
        // Predicated region
        $region65: #{tpu_custom_call.1} parent=47 // pred_check
          %p622 = pneg %p257
        $region66: #{tpu_custom_call.1} parent=47 // pred_check_branch
          %624 = sbr.rel (%p622) target = $region68
        $region67: #{tpu_custom_call.1} parent=47 // pred_region
          %626 = vsyncadd %s608, 0
          %s627 = sadd.s32 %s39, %s38
          %s628 = sadd.s32 %s627, %s37
          %s629 = smul.addr %s628, 8
          %s630 = scalar_lea.hbm %s7, %s629
          %s632 = sshll.u32 %s611, 4
          %s633 = int_to_ptr.vmem [resolvable:$true] %s632
          %s634 = sshll.u32 %s630, 4
          %s635 = int_to_ptr.hbm [resolvable:$true] %s634
          %637 = dma.vmem_to_hbm [thread:$0]  %s633, 128, %s635, %s608
        $region68: #{tpu_custom_call.1} parent=47 // pred_fallthru
          _
        // Predicated region
        $region69: #{tpu_custom_call.1} parent=47 // pred_check
          %p638 = pneg %p287
        $region70: #{tpu_custom_call.1} parent=47 // pred_check_branch
          %640 = sbr.rel (%p638) target = $region72
        $region71: #{tpu_custom_call.1} parent=47 // pred_region
          %642 = vsyncadd %s613, 0
          %s643 = sadd.s32 %s39, %s38
          %s644 = sadd.s32 %s643, %s37
          %s645 = smul.addr %s644, 8
          %s646 = scalar_lea.hbm %s8, %s645
          %s648 = sshll.u32 %s616, 4
          %s649 = int_to_ptr.vmem [resolvable:$true] %s648
          %s650 = sshll.u32 %s646, 4
          %s651 = int_to_ptr.hbm [resolvable:$true] %s650
          %653 = dma.vmem_to_hbm [thread:$0]  %s649, 128, %s651, %s613
        $region72: #{tpu_custom_call.1} parent=47 // pred_fallthru
          _
        // Predicated region
        $region73: #{tpu_custom_call.1} parent=47 // pred_check
          %p654 = pneg %p317
        $region74: #{tpu_custom_call.1} parent=47 // pred_check_branch
          %656 = sbr.rel (%p654) target = $region76
        $region75: #{tpu_custom_call.1} parent=47 // pred_region
          %658 = vsyncadd %s618, 0
          %s659 = sadd.s32 %s39, %s38
          %s660 = sadd.s32 %s659, %s37
          %s661 = smul.addr %s660, 8
          %s662 = scalar_lea.hbm %s9, %s661
          %s664 = sshll.u32 %s621, 4
          %s665 = int_to_ptr.vmem [resolvable:$true] %s664
          %s666 = sshll.u32 %s662, 4
          %s667 = int_to_ptr.hbm [resolvable:$true] %s666
          %669 = dma.vmem_to_hbm [thread:$0]  %s665, 128, %s667, %s618
        $region76: #{tpu_custom_call.1} parent=47 // pred_fallthru
          _
      $region48: #{tpu_custom_call.1} parent=5 // pred_fallthru
        _
      %p670 = scmp.le.s32.totalorder 2, %s27
      // Predicated region
      $region77: #{tpu_custom_call.1} parent=5 // pred_check
        %p671 = pneg %p670
      $region78: #{tpu_custom_call.1} parent=5 // pred_check_branch
        %673 = sbr.rel (%p671) target = $region80
      $region79: #{tpu_custom_call.1} parent=5 // pred_region
        %s674 = ssub.s32 %s27, 2
        // Predicated region
        $region81: #{tpu_custom_call.1} parent=79 // pred_check
          %p675 = pneg %p263
        $region82: #{tpu_custom_call.1} parent=79 // pred_check_branch
          %677 = sbr.rel (%p675) target = $region84
        $region83: #{tpu_custom_call.1} parent=79 // pred_region
          %s678 = sand.u32 %s248, 1
          %s679 = scalar_lea.sflag [#allocation4], %s678
          %s680 = sand.u32 %s248, 1
          %s681 = smul.addr %s680, 8
          %s682 = scalar_lea.vmem [#allocation10], %s681
          %684 = dma.done %s679, 128
        $region84: #{tpu_custom_call.1} parent=79 // pred_fallthru
          _
        // Predicated region
        $region85: #{tpu_custom_call.1} parent=79 // pred_check
          %p685 = pneg %p293
        $region86: #{tpu_custom_call.1} parent=79 // pred_check_branch
          %687 = sbr.rel (%p685) target = $region88
        $region87: #{tpu_custom_call.1} parent=79 // pred_region
          %s688 = sand.u32 %s33, 1
          %s689 = scalar_lea.sflag [#allocation12], %s688
          %s690 = sand.u32 %s278, 1
          %s691 = smul.addr %s690, 8
          %s692 = scalar_lea.vmem [#allocation11], %s691
          %694 = dma.done %s689, 128
        $region88: #{tpu_custom_call.1} parent=79 // pred_fallthru
          _
        // Predicated region
        $region89: #{tpu_custom_call.1} parent=79 // pred_check
          %p695 = pneg %p323
        $region90: #{tpu_custom_call.1} parent=79 // pred_check_branch
          %697 = sbr.rel (%p695) target = $region92
        $region91: #{tpu_custom_call.1} parent=79 // pred_region
          %s698 = sand.u32 %s33, 1
          %s699 = scalar_lea.sflag [#allocation12], %s698
          %s700 = sand.u32 %s308, 1
          %s701 = smul.addr %s700, 8
          %s702 = scalar_lea.vmem [#allocation13], %s701
          %704 = dma.done %s699, 128
        $region92: #{tpu_custom_call.1} parent=79 // pred_fallthru
          _
      $region80: #{tpu_custom_call.1} parent=5 // pred_fallthru
        _
    $region6: #{tpu_custom_call.1} parent=1 // loop_footer
      %s31 = sadd.s32 1, %s27
    $region7: #{tpu_custom_call.1} parent=1 // loop_footer_branch
      %26 = sbr.rel target = $region3
    $region8: #{tpu_custom_call.1} parent=1 // loop_exit
      _
    %705 = vsyncpa [#allocation3], 1
    %s706 = scalar_lea.sflag [#allocation3], 1
    %707 = vsyncpa %s706, 1
    %708 = vsyncpa [#allocation6], 1
    %709 = vsyncpa [#allocation9], 1
    %710 = vsyncpa [#allocation4], 1
    %s711 = scalar_lea.sflag [#allocation4], 1
    %712 = vsyncpa %s711, 1
    %713 = vsyncpa [#allocation12], 1
    %s714 = scalar_lea.sflag [#allocation12], 1
    %715 = vsyncpa %s714, 1

</llo_original>
